<compile_context>
chip_gen: v6e
topology: v6e:2x2x1
jax: 0.10.0
libtpu: 0.0.40
codegen_flags: <defaults>
</compile_context>

<pallas_src>
import functools

import jax
import jax.numpy as jnp
from jax.experimental import pallas as pl
from jax.experimental.pallas import tpu as pltpu


def _round_up(v, m):
    return (v + m - 1) // m * m


def _ppo_kernel(x_ref, mask_ref, slab_ref, out_ref, *, output_dim):
    K0 = x_ref.shape[1]          # padded input feature width (multiple of 8)
    W = out_ref.shape[1]         # lane width (multiple of 128)

    x = x_ref[...]

    # --- static, tile-aligned slices of the packed parameter slab ---
    r = 0
    w1 = slab_ref[r:r + K0, :]; r += K0
    w2 = slab_ref[r:r + W, :];  r += W
    w3 = slab_ref[r:r + W, :];  r += W
    w4 = slab_ref[r:r + W, :];  r += W
    wpf = slab_ref[r:r + W, :]; r += W          # fused policy+value head
    biases = slab_ref[r:r + 8, :]               # rows: b1,b2,b3,b4,bpf
    b1 = biases[0:1, :]
    b2 = biases[1:2, :]
    b3 = biases[2:3, :]
    b4 = biases[3:4, :]
    bpf = biases[4:5, :]

    # --- shared_layers: 4 x (Linear -> ReLU), padded lanes stay exactly 0 ---
    h = jnp.maximum(jnp.dot(x, w1, preferred_element_type=jnp.float32) + b1, 0.0)
    h = jnp.maximum(jnp.dot(h, w2, preferred_element_type=jnp.float32) + b2, 0.0)
    h = jnp.maximum(jnp.dot(h, w3, preferred_element_type=jnp.float32) + b3, 0.0)
    h = jnp.maximum(jnp.dot(h, w4, preferred_element_type=jnp.float32) + b4, 0.0)

    # --- F.normalize(dim=-1): x / max(||x||, 1e-12) == x * rsqrt(max(||x||^2, 1e-24))
    sumsq = jnp.sum(h * h, axis=-1, keepdims=True)
    h = h * jax.lax.rsqrt(jnp.maximum(sumsq, jnp.float32(1e-24)))

    # --- fused policy+value head: one matmul; column `output_dim` is the value ---
    logits = jnp.dot(h, wpf, preferred_element_type=jnp.float32) + bpf

    # masked softmax (mask is 0 on padded lanes and on the value lane)
    mask = mask_ref[...]
    masked = jnp.where(mask != 0.0, logits, -jnp.inf)
    m = jnp.max(masked, axis=-1, keepdims=True)
    e = jnp.exp(masked - m)
    p = e * pl.reciprocal(jnp.sum(e, axis=-1, keepdims=True))

    # clamp + renormalize over the real policy lanes only
    p = jnp.clip(p, 1e-7, 1.0)
    lane = jax.lax.broadcasted_iota(jnp.int32, p.shape, dimension=1)
    p = jnp.where(lane < output_dim, p, 0.0)
    p = p * pl.reciprocal(jnp.sum(p, axis=-1, keepdims=True))

    # single lane-dense store: [policy_0..policy_{out-1} | value | 0 ...]
    out_ref[...] = jnp.where(lane == output_dim, logits, p).astype(out_ref.dtype)


def pack_params(params, input_dim, hidden_dim, output_dim):
    """Pack the 12 weight/bias tensors into one zero-padded (rows, W) slab.

    Weights are stored (in, out) i.e. already transposed vs torch's (out, in).
    The value head (wv, bv) is fused as column `output_dim` of the policy head.
    """
    (w1, b1, w2, b2, w3, b3, w4, b4, wp, bp, wv, bv) = params
    W = _round_up(max(hidden_dim, output_dim + 1), 128)
    K0 = _round_up(input_dim, 8)
    rows = K0 + 4 * W + 8

    slab = jnp.zeros((rows, W), jnp.float32)
    slab = slab.at[:input_dim, :hidden_dim].set(w1)
    r = K0
    for w in (w2, w3, w4):
        slab = slab.at[r:r + hidden_dim, :hidden_dim].set(w)
        r += W
    # fused policy + value head
    slab = slab.at[r:r + hidden_dim, :output_dim].set(wp)
    slab = slab.at[r:r + hidden_dim, output_dim:output_dim + 1].set(wv)
    r += W
    # biases
    slab = slab.at[r + 0, :hidden_dim].set(b1[0])
    slab = slab.at[r + 1, :hidden_dim].set(b2[0])
    slab = slab.at[r + 2, :hidden_dim].set(b3[0])
    slab = slab.at[r + 3, :hidden_dim].set(b4[0])
    slab = slab.at[r + 4, :output_dim].set(bp[0])
    slab = slab.at[r + 4, output_dim].set(bv[0, 0])
    return slab


def alternative_network_forward(x, action_mask, slab):
    """Pallas TPU forward pass. Returns (policy (B,out), value (B,1))."""
    B, input_dim = x.shape
    output_dim = action_mask.shape[-1]
    W = slab.shape[1]
    K0 = _round_up(input_dim, 8)
    Bp = _round_up(B, 8)

    # zero-pad batch to a sublane multiple and features/mask to the slab layout
    x_pad = jnp.zeros((Bp, K0), jnp.float32).at[:B, :input_dim].set(x)
    mask_pad = jnp.zeros((Bp, W), jnp.float32).at[:B, :output_dim].set(action_mask)

    vmem = pl.BlockSpec(memory_space=pltpu.MemorySpace.VMEM)
    out = pl.pallas_call(
        functools.partial(_ppo_kernel, output_dim=output_dim),
        out_shape=jax.ShapeDtypeStruct((Bp, W), jnp.float32),
        in_specs=[vmem, vmem, vmem],
        out_specs=vmem,
    )(x_pad, mask_pad, slab)

    policy = out[:B, :output_dim]
    value = out[:B, output_dim:output_dim + 1]
    return policy, value


def init_params(key, input_dim, hidden_dim, output_dim):
    """Deterministic synthetic parameters. Weights stored as (in, out)."""
    ks = jax.random.split(key, 12)

    def lin(kw, kb, fan_in, fan_out):
        w = jax.random.normal(kw, (fan_in, fan_out), jnp.float32) * (1.0 / jnp.sqrt(fan_in))
        b = jax.random.normal(kb, (1, fan_out), jnp.float32) * 0.01
        return w, b

    w1, b1 = lin(ks[0], ks[1], input_dim, hidden_dim)
    w2, b2 = lin(ks[2], ks[3], hidden_dim, hidden_dim)
    w3, b3 = lin(ks[4], ks[5], hidden_dim, hidden_dim)
    w4, b4 = lin(ks[6], ks[7], hidden_dim, hidden_dim)
    wp, bp = lin(ks[8], ks[9], hidden_dim, output_dim)
    wv, bv = lin(ks[10], ks[11], hidden_dim, 1)
    return (w1, b1, w2, b2, w3, b3, w4, b4, wp, bp, wv, bv)


def _reference_forward(x, action_mask, params):
    """Pure-JAX reference mirroring the PyTorch module."""
    (w1, b1, w2, b2, w3, b3, w4, b4, wp, bp, wv, bv) = params
    h = x
    for w, b in ((w1, b1), (w2, b2), (w3, b3), (w4, b4)):
        h = jnp.maximum(h @ w + b, 0.0)
    h = h / jnp.maximum(jnp.sqrt(jnp.sum(h * h, -1, keepdims=True)), 1e-12)
    logits = h @ wp + bp
    masked = jnp.where(action_mask == 0, -jnp.inf, logits)
    p = jax.nn.softmax(masked, axis=-1)
    p = jnp.clip(p, 1e-7, 1.0)
    p = p / jnp.sum(p, -1, keepdims=True)
    v = h @ wv + bv
    return p, v


if __name__ == "__main__":
    key = jax.random.PRNGKey(0)
    k_param, k_x, k_mask = jax.random.split(key, 3)

    B, input_dim, hidden_dim, output_dim = 8, 16, 32, 8

    params = init_params(k_param, input_dim, hidden_dim, output_dim)
    slab = pack_params(params, input_dim, hidden_dim, output_dim)  # done once, reused per step

    x = jax.random.normal(k_x, (B, input_dim), jnp.float32)
    # random 0/1 mask; force at least one allowed action per row
    mask = (jax.random.uniform(k_mask, (B, output_dim)) > 0.4).astype(jnp.float32)
    mask = mask.at[:, 0].set(1.0)

    fwd = jax.jit(alternative_network_forward)
    policy, value = fwd(x, mask, slab)
    jax.block_until_ready((policy, value))

    p_ref, v_ref = _reference_forward(x, mask, params)
    assert jnp.allclose(policy, p_ref, atol=1e-5, rtol=1e-5)
    assert jnp.allclose(value, v_ref, atol=1e-5, rtol=1e-5)
    assert jnp.allclose(jnp.sum(policy, -1), 1.0, atol=1e-5)

    print("KERNEL_OK")
</pallas_src>

<mosaic_0001>
module attributes {stable_mosaic.version = 11 : i64} {
  func.func @_ppo_kernel(%arg0: memref<8x16xf32, #tpu.memory_space<vmem>>, %arg1: memref<8x128xf32, #tpu.memory_space<vmem>>, %arg2: memref<536x128xf32, #tpu.memory_space<vmem>>, %arg3: memref<8x128xf32, #tpu.memory_space<vmem>>) attributes {dimension_semantics = [], scalar_prefetch = 0 : i64, scratch_operands = 0 : i64, tpu.core_type = #tpu.core_type<tc>} {
    %c0 = arith.constant 0 : index
    %c0_0 = arith.constant 0 : index
    %0 = vector.load %arg0[%c0, %c0_0] : memref<8x16xf32, #tpu.memory_space<vmem>>, vector<8x16xf32>
    %c0_1 = arith.constant 0 : index
    %c0_2 = arith.constant 0 : index
    %1 = vector.load %arg2[%c0_1, %c0_2] : memref<536x128xf32, #tpu.memory_space<vmem>>, vector<16x128xf32>
    %c16 = arith.constant 16 : index
    %c0_3 = arith.constant 0 : index
    %2 = vector.load %arg2[%c16, %c0_3] : memref<536x128xf32, #tpu.memory_space<vmem>>, vector<128x128xf32>
    %c144 = arith.constant 144 : index
    %c0_4 = arith.constant 0 : index
    %3 = vector.load %arg2[%c144, %c0_4] : memref<536x128xf32, #tpu.memory_space<vmem>>, vector<128x128xf32>
    %c272 = arith.constant 272 : index
    %c0_5 = arith.constant 0 : index
    %4 = vector.load %arg2[%c272, %c0_5] : memref<536x128xf32, #tpu.memory_space<vmem>>, vector<128x128xf32>
    %c400 = arith.constant 400 : index
    %c0_6 = arith.constant 0 : index
    %5 = vector.load %arg2[%c400, %c0_6] : memref<536x128xf32, #tpu.memory_space<vmem>>, vector<128x128xf32>
    %c528 = arith.constant 528 : index
    %c0_7 = arith.constant 0 : index
    %6 = vector.load %arg2[%c528, %c0_7] : memref<536x128xf32, #tpu.memory_space<vmem>>, vector<8x128xf32>
    %7 = vector.extract_strided_slice %6 {offsets = [0, 0], sizes = [1, 128], strides = [1, 1]} : vector<8x128xf32> to vector<1x128xf32>
    %8 = vector.extract_strided_slice %6 {offsets = [1, 0], sizes = [1, 128], strides = [1, 1]} : vector<8x128xf32> to vector<1x128xf32>
    %9 = vector.extract_strided_slice %6 {offsets = [2, 0], sizes = [1, 128], strides = [1, 1]} : vector<8x128xf32> to vector<1x128xf32>
    %10 = vector.extract_strided_slice %6 {offsets = [3, 0], sizes = [1, 128], strides = [1, 1]} : vector<8x128xf32> to vector<1x128xf32>
    %11 = vector.extract_strided_slice %6 {offsets = [4, 0], sizes = [1, 128], strides = [1, 1]} : vector<8x128xf32> to vector<1x128xf32>
    %cst = arith.constant dense<0.000000e+00> : vector<8x128xf32>
    %12 = tpu.matmul %0, %1, %cst {dimension_numbers = #tpu.dot_dimension_numbers<[1], [0], [0], [1], [0, 0, 1, 1], [], []>} : vector<8x16xf32>, vector<16x128xf32>, vector<8x128xf32> -> vector<8x128xf32>
    %13 = vector.broadcast %7 : vector<1x128xf32> to vector<8x128xf32>
    %14 = arith.addf %12, %13 : vector<8x128xf32>
    %cst_8 = arith.constant 0.000000e+00 : f32
    %15 = vector.broadcast %cst_8 : f32 to vector<8x128xf32>
    %16 = arith.maximumf %14, %15 : vector<8x128xf32>
    %cst_9 = arith.constant dense<0.000000e+00> : vector<8x128xf32>
    %17 = tpu.matmul %16, %2, %cst_9 {dimension_numbers = #tpu.dot_dimension_numbers<[1], [0], [0], [1], [0, 0, 1, 1], [], []>} : vector<8x128xf32>, vector<128x128xf32>, vector<8x128xf32> -> vector<8x128xf32>
    %18 = vector.broadcast %8 : vector<1x128xf32> to vector<8x128xf32>
    %19 = arith.addf %17, %18 : vector<8x128xf32>
    %cst_10 = arith.constant 0.000000e+00 : f32
    %20 = vector.broadcast %cst_10 : f32 to vector<8x128xf32>
    %21 = arith.maximumf %19, %20 : vector<8x128xf32>
    %cst_11 = arith.constant dense<0.000000e+00> : vector<8x128xf32>
    %22 = tpu.matmul %21, %3, %cst_11 {dimension_numbers = #tpu.dot_dimension_numbers<[1], [0], [0], [1], [0, 0, 1, 1], [], []>} : vector<8x128xf32>, vector<128x128xf32>, vector<8x128xf32> -> vector<8x128xf32>
    %23 = vector.broadcast %9 : vector<1x128xf32> to vector<8x128xf32>
    %24 = arith.addf %22, %23 : vector<8x128xf32>
    %cst_12 = arith.constant 0.000000e+00 : f32
    %25 = vector.broadcast %cst_12 : f32 to vector<8x128xf32>
    %26 = arith.maximumf %24, %25 : vector<8x128xf32>
    %cst_13 = arith.constant dense<0.000000e+00> : vector<8x128xf32>
    %27 = tpu.matmul %26, %4, %cst_13 {dimension_numbers = #tpu.dot_dimension_numbers<[1], [0], [0], [1], [0, 0, 1, 1], [], []>} : vector<8x128xf32>, vector<128x128xf32>, vector<8x128xf32> -> vector<8x128xf32>
    %28 = vector.broadcast %10 : vector<1x128xf32> to vector<8x128xf32>
    %29 = arith.addf %27, %28 : vector<8x128xf32>
    %cst_14 = arith.constant 0.000000e+00 : f32
    %30 = vector.broadcast %cst_14 : f32 to vector<8x128xf32>
    %31 = arith.maximumf %29, %30 : vector<8x128xf32>
    %32 = arith.mulf %31, %31 : vector<8x128xf32>
    %cst_15 = arith.constant dense<0.000000e+00> : vector<8xf32>
    %33 = vector.multi_reduction <add>, %32, %cst_15 [1] : vector<8x128xf32> to vector<8xf32>
    %34 = vector.shape_cast %33 : vector<8xf32> to vector<8x1xf32>
    %cst_16 = arith.constant 1.000000e-24 : f32
    %35 = vector.broadcast %cst_16 : f32 to vector<8x1xf32>
    %36 = arith.maximumf %34, %35 : vector<8x1xf32>
    %37 = math.rsqrt %36 : vector<8x1xf32>
    %38 = vector.broadcast %37 : vector<8x1xf32> to vector<8x128xf32>
    %39 = arith.mulf %31, %38 : vector<8x128xf32>
    %cst_17 = arith.constant dense<0.000000e+00> : vector<8x128xf32>
    %40 = tpu.matmul %39, %5, %cst_17 {dimension_numbers = #tpu.dot_dimension_numbers<[1], [0], [0], [1], [0, 0, 1, 1], [], []>} : vector<8x128xf32>, vector<128x128xf32>, vector<8x128xf32> -> vector<8x128xf32>
    %41 = vector.broadcast %11 : vector<1x128xf32> to vector<8x128xf32>
    %42 = arith.addf %40, %41 : vector<8x128xf32>
    %c0_18 = arith.constant 0 : index
    %c0_19 = arith.constant 0 : index
    %43 = vector.load %arg1[%c0_18, %c0_19] : memref<8x128xf32, #tpu.memory_space<vmem>>, vector<8x128xf32>
    %cst_20 = arith.constant 0.000000e+00 : f32
    %44 = vector.broadcast %cst_20 : f32 to vector<8x128xf32>
    %45 = arith.cmpf one, %43, %44 : vector<8x128xf32>
    %cst_21 = arith.constant 0xFF800000 : f32
    %46 = vector.broadcast %cst_21 : f32 to vector<8x128xf32>
    %47 = arith.select %45, %42, %46 : vector<8x128xi1>, vector<8x128xf32>
    %cst_22 = arith.constant dense<0xFF800000> : vector<8xf32>
    %48 = vector.multi_reduction <maximumf>, %47, %cst_22 [1] : vector<8x128xf32> to vector<8xf32>
    %49 = vector.shape_cast %48 : vector<8xf32> to vector<8x1xf32>
    %50 = vector.broadcast %49 : vector<8x1xf32> to vector<8x128xf32>
    %51 = arith.subf %47, %50 : vector<8x128xf32>
    %52 = math.exp %51 : vector<8x128xf32>
    %cst_23 = arith.constant dense<0.000000e+00> : vector<8xf32>
    %53 = vector.multi_reduction <add>, %52, %cst_23 [1] : vector<8x128xf32> to vector<8xf32>
    %54 = vector.shape_cast %53 : vector<8xf32> to vector<8x1xf32>
    %55 = tpu.reciprocal %54 : vector<8x1xf32> -> vector<8x1xf32>
    %56 = vector.broadcast %55 : vector<8x1xf32> to vector<8x128xf32>
    %57 = arith.mulf %52, %56 : vector<8x128xf32>
    %cst_24 = arith.constant 1.000000e-07 : f32
    %cst_25 = arith.constant 1.000000e+00 : f32
    %58 = vector.broadcast %cst_24 : f32 to vector<8x128xf32>
    %59 = arith.maximumf %58, %57 : vector<8x128xf32>
    %60 = vector.broadcast %cst_25 : f32 to vector<8x128xf32>
    %61 = arith.minimumf %60, %59 : vector<8x128xf32>
    %62 = tpu.iota {dimensions = array<i32: 1>} : vector<8x128xi32>
    %c8_i32 = arith.constant 8 : i32
    %63 = vector.broadcast %c8_i32 : i32 to vector<8x128xi32>
    %64 = arith.cmpi slt, %62, %63 : vector<8x128xi32>
    %cst_26 = arith.constant 0.000000e+00 : f32
    %65 = vector.broadcast %cst_26 : f32 to vector<8x128xf32>
    %66 = arith.select %64, %61, %65 : vector<8x128xi1>, vector<8x128xf32>
    %cst_27 = arith.constant dense<0.000000e+00> : vector<8xf32>
    %67 = vector.multi_reduction <add>, %66, %cst_27 [1] : vector<8x128xf32> to vector<8xf32>
    %68 = vector.shape_cast %67 : vector<8xf32> to vector<8x1xf32>
    %69 = tpu.reciprocal %68 : vector<8x1xf32> -> vector<8x1xf32>
    %70 = vector.broadcast %69 : vector<8x1xf32> to vector<8x128xf32>
    %71 = arith.mulf %66, %70 : vector<8x128xf32>
    %c8_i32_28 = arith.constant 8 : i32
    %72 = vector.broadcast %c8_i32_28 : i32 to vector<8x128xi32>
    %73 = arith.cmpi eq, %62, %72 : vector<8x128xi32>
    %74 = arith.select %73, %42, %71 : vector<8x128xi1>, vector<8x128xf32>
    %c0_29 = arith.constant 0 : index
    %c0_30 = arith.constant 0 : index
    %75 = vector.load %arg3[%c0_29, %c0_30] : memref<8x128xf32, #tpu.memory_space<vmem>>, vector<8x128xf32>
    tpu.vector_store %arg3[%c0_29, %c0_30], %74 {strides = array<i32>} : memref<8x128xf32, #tpu.memory_space<vmem>>, vector<8x128xf32>,
    return
  }
}

</mosaic_0001>

<llo_original>
// kernel: alternative_network_forward.1
$region0: #{alternative_network_forward.1}
  #allocation0 [shape = 'u32[]', space=smem, size = 0x4, offset = 0x4, fixed_abs, tag = 'smem constant byte address 0x4 - core index']
  #allocation1 [shape = 'u32[144,128]{1,0:T(1,128)}', space=vmem, size = 0x12000, scoped, tag = 'internal scratch']
  %s0 = inlined_call_operand.vmem [shape: f32[8,16], index: 0, kind: input, shape index: {}]
  %s1 = inlined_call_operand.vmem [shape: f32[8,128], index: 1, kind: input, shape index: {}]
  %s2 = inlined_call_operand.hbm [shape: f32[536,128], index: 2, kind: input, shape index: {}]
  %s3 = inlined_call_operand.vmem [shape: f32[8,128], index: 3, kind: output, shape index: {}]
  %s4 = sld [smem:[#allocation0]]
  $region26: #{alternative_network_forward.1} parent=0
    _
  %s6 = ssub.s32 1, %s4
  %s7 = scalar_select 0, %s6, %s4
  $region1: #{alternative_network_forward.1} parent=0
    #allocation2 [shape = 'u8[274432]{0}', space=vmem, size = 0x43000, scoped, tag = 'input window, operand 2, single buffered']
    #allocation3 [shape = 's32[1]{0}', space=sflag, size = 0x4, scoped, tag = 'scoped memory for alternative_network_forward.1']
    %8 = vsyncpa [#allocation3], 0
    // Predicated region
    $region2: #{alternative_network_forward.1} parent=1 // pred_check
      _
    $region3: #{alternative_network_forward.1} parent=1 // pred_check_branch
      %10 = sbr.rel (0) target = $region5
    $region4: #{alternative_network_forward.1} parent=1 // pred_region
      _
    $region5: #{alternative_network_forward.1} parent=1 // pred_fallthru
      _
    // Predicated region
    $region6: #{alternative_network_forward.1} parent=1 // pred_check
      _
    $region7: #{alternative_network_forward.1} parent=1 // pred_check_branch
      %12 = sbr.rel (0) target = $region9
    $region8: #{alternative_network_forward.1} parent=1 // pred_region
      _
    $region9: #{alternative_network_forward.1} parent=1 // pred_fallthru
      _
    // Predicated region
    $region10: #{alternative_network_forward.1} parent=1 // pred_check
      _
    $region11: #{alternative_network_forward.1} parent=1 // pred_check_branch
      %14 = sbr.rel (0) target = $region13
    $region12: #{alternative_network_forward.1} parent=1 // pred_region
      %s16 = ssub.s32 8576, 8576
      %17 = vsyncadd [#allocation3], %s16
      %s18 = sshll.u32 [#allocation2], 4
      %s19 = int_to_ptr.vmem [resolvable:$true] %s18
      %24 = dma.hbm_to_vmem [thread:$0]  %s2, 8576, %s19, [#allocation3], 128, 128, 8
    $region13: #{alternative_network_forward.1} parent=1 // pred_fallthru
      _
    // Predicated region
    $region14: #{alternative_network_forward.1} parent=1 // pred_check
      _
    $region15: #{alternative_network_forward.1} parent=1 // pred_check_branch
      %26 = sbr.rel (0) target = $region17
    $region16: #{alternative_network_forward.1} parent=1 // pred_region
      %27 = dma.done [#allocation3], 8576
    $region17: #{alternative_network_forward.1} parent=1 // pred_fallthru
      _
    %v28 = vld [vmem:[%s0] sm:$0xff]
    %v29 = vld [vmem:[#allocation2] sm:$0xff]
    %v30 = vld [vmem:[#allocation2 + $0x8] sm:$0xff]
    %v31 = vld [vmem:[#allocation2 + $0x10] sm:$0xff]
    %v32 = vld [vmem:[#allocation2 + $0x18] sm:$0xff]
    %v33 = vld [vmem:[#allocation2 + $0x20] sm:$0xff]
    %v34 = vld [vmem:[#allocation2 + $0x28] sm:$0xff]
    %v35 = vld [vmem:[#allocation2 + $0x30] sm:$0xff]
    %v36 = vld [vmem:[#allocation2 + $0x38] sm:$0xff]
    %v37 = vld [vmem:[#allocation2 + $0x40] sm:$0xff]
    %v38 = vld [vmem:[#allocation2 + $0x48] sm:$0xff]
    %v39 = vld [vmem:[#allocation2 + $0x50] sm:$0xff]
    %v40 = vld [vmem:[#allocation2 + $0x58] sm:$0xff]
    %v41 = vld [vmem:[#allocation2 + $0x60] sm:$0xff]
    %v42 = vld [vmem:[#allocation2 + $0x68] sm:$0xff]
    %v43 = vld [vmem:[#allocation2 + $0x70] sm:$0xff]
    %v44 = vld [vmem:[#allocation2 + $0x78] sm:$0xff]
    %v45 = vld [vmem:[#allocation2 + $0x80] sm:$0xff]
    %v46 = vld [vmem:[#allocation2 + $0x88] sm:$0xff]
    %v47 = vld [vmem:[#allocation2 + $0x90] sm:$0xff]
    %v48 = vld [vmem:[#allocation2 + $0x98] sm:$0xff]
    %v49 = vld [vmem:[#allocation2 + $0xa0] sm:$0xff]
    %v50 = vld [vmem:[#allocation2 + $0xa8] sm:$0xff]
    %v51 = vld [vmem:[#allocation2 + $0xb0] sm:$0xff]
    %v52 = vld [vmem:[#allocation2 + $0xb8] sm:$0xff]
    %v53 = vld [vmem:[#allocation2 + $0xc0] sm:$0xff]
    %v54 = vld [vmem:[#allocation2 + $0xc8] sm:$0xff]
    %v55 = vld [vmem:[#allocation2 + $0xd0] sm:$0xff]
    %v56 = vld [vmem:[#allocation2 + $0xd8] sm:$0xff]
    %v57 = vld [vmem:[#allocation2 + $0xe0] sm:$0xff]
    %v58 = vld [vmem:[#allocation2 + $0xe8] sm:$0xff]
    %v59 = vld [vmem:[#allocation2 + $0xf0] sm:$0xff]
    %v60 = vld [vmem:[#allocation2 + $0xf8] sm:$0xff]
    %v61 = vld [vmem:[#allocation2 + $0x100] sm:$0xff]
    %v62 = vld [vmem:[#allocation2 + $0x108] sm:$0xff]
    %v63 = vld [vmem:[#allocation2 + $0x110] sm:$0xff]
    %v64 = vld [vmem:[#allocation2 + $0x118] sm:$0xff]
    %v65 = vld [vmem:[#allocation2 + $0x120] sm:$0xff]
    %v66 = vld [vmem:[#allocation2 + $0x128] sm:$0xff]
    %v67 = vld [vmem:[#allocation2 + $0x130] sm:$0xff]
    %v68 = vld [vmem:[#allocation2 + $0x138] sm:$0xff]
    %v69 = vld [vmem:[#allocation2 + $0x140] sm:$0xff]
    %v70 = vld [vmem:[#allocation2 + $0x148] sm:$0xff]
    %v71 = vld [vmem:[#allocation2 + $0x150] sm:$0xff]
    %v72 = vld [vmem:[#allocation2 + $0x158] sm:$0xff]
    %v73 = vld [vmem:[#allocation2 + $0x160] sm:$0xff]
    %v74 = vld [vmem:[#allocation2 + $0x168] sm:$0xff]
    %v75 = vld [vmem:[#allocation2 + $0x170] sm:$0xff]
    %v76 = vld [vmem:[#allocation2 + $0x178] sm:$0xff]
    %v77 = vld [vmem:[#allocation2 + $0x180] sm:$0xff]
    %v78 = vld [vmem:[#allocation2 + $0x188] sm:$0xff]
    %v79 = vld [vmem:[#allocation2 + $0x190] sm:$0xff]
    %v80 = vld [vmem:[#allocation2 + $0x198] sm:$0xff]
    %v81 = vld [vmem:[#allocation2 + $0x1a0] sm:$0xff]
    %v82 = vld [vmem:[#allocation2 + $0x1a8] sm:$0xff]
    %v83 = vld [vmem:[#allocation2 + $0x1b0] sm:$0xff]
    %v84 = vld [vmem:[#allocation2 + $0x1b8] sm:$0xff]
    %v85 = vld [vmem:[#allocation2 + $0x1c0] sm:$0xff]
    %v86 = vld [vmem:[#allocation2 + $0x1c8] sm:$0xff]
    %v87 = vld [vmem:[#allocation2 + $0x1d0] sm:$0xff]
    %v88 = vld [vmem:[#allocation2 + $0x1d8] sm:$0xff]
    %v89 = vld [vmem:[#allocation2 + $0x1e0] sm:$0xff]
    %v90 = vld [vmem:[#allocation2 + $0x1e8] sm:$0xff]
    %v91 = vld [vmem:[#allocation2 + $0x1f0] sm:$0xff]
    %v92 = vld [vmem:[#allocation2 + $0x1f8] sm:$0xff]
    %v93 = vld [vmem:[#allocation2 + $0x200] sm:$0xff]
    %v94 = vld [vmem:[#allocation2 + $0x208] sm:$0xff]
    %v95 = vld [vmem:[#allocation2 + $0x210] sm:$0xff]
    %v96 = vlaneseq
    %v97 = vshrl.u32 %v96, 7
    %v98 = vsub.s32 0, %v97
    %v99 = vrot.slane %v95, %v98
    %vm100 = vcmask 130048
    %v102 = vsel %vm100, %v28, 0
    %104 = vmatprep.subr.mxu0 0.0
    %105 = vmatpush1.msra.mxu0 0.0
    %106 = vmatprep.subr.mxu0 0.0
    %107 = vmatpush1.msra.mxu0 0.0
    %108 = vmatprep.subr.mxu0 0.0
    %109 = vmatpush1.msra.mxu0 0.0
    %110 = vmatprep.subr.mxu0 0.0
    %111 = vmatpush1.msra.mxu0 0.0
    %112 = vmatprep.subr.mxu0 0.0
    %113 = vmatpush1.msra.mxu0 0.0
    %114 = vmatprep.subr.mxu0 0.0
    %115 = vmatpush1.msra.mxu0 0.0
    %116 = vmatprep.subr.mxu0 0.0
    %117 = vmatpush1.msra.mxu0 0.0
    %118 = vmatprep.subr.mxu0 0.0
    %119 = vmatpush1.msra.mxu0 0.0
    %120 = vmatprep.subr.mxu0 0.0
    %121 = vmatpush1.msra.mxu0 0.0
    %122 = vmatprep.subr.mxu0 0.0
    %123 = vmatpush1.msra.mxu0 0.0
    %124 = vmatprep.subr.mxu0 0.0
    %125 = vmatpush1.msra.mxu0 0.0
    %126 = vmatprep.subr.mxu0 0.0
    %127 = vmatpush1.msra.mxu0 0.0
    %128 = vmatprep.subr.mxu0 0.0
    %129 = vmatpush1.msra.mxu0 0.0
    %130 = vmatprep.subr.mxu0 0.0
    %131 = vmatpush1.msra.mxu0 0.0
    %132 = vmatprep.subr.mxu0 0.0
    %133 = vmatpush1.msra.mxu0 %v30
    %134 = vmatprep.subr.mxu0 0.0
    %135 = vmatpush1.msra.mxu0 %v29
    %136 = vmatprep.subr.mxu0 0.0
    %137 = vmatpush2.msra.mxu0 0.0
    %138 = vmatprep.subr.mxu0 0.0
    %139 = vmatpush2.msra.mxu0 0.0
    %140 = vmatprep.subr.mxu0 0.0
    %141 = vmatpush2.msra.mxu0 0.0
    %142 = vmatprep.subr.mxu0 0.0
    %143 = vmatpush2.msra.mxu0 0.0
    %144 = vmatprep.subr.mxu0 0.0
    %145 = vmatpush2.msra.mxu0 0.0
    %146 = vmatprep.subr.mxu0 0.0
    %147 = vmatpush2.msra.mxu0 0.0
    %148 = vmatprep.subr.mxu0 0.0
    %149 = vmatpush2.msra.mxu0 0.0
    %150 = vmatprep.subr.mxu0 0.0
    %151 = vmatpush2.msra.mxu0 0.0
    %152 = vmatprep.subr.mxu0 0.0
    %153 = vmatpush2.msra.mxu0 0.0
    %154 = vmatprep.subr.mxu0 0.0
    %155 = vmatpush2.msra.mxu0 0.0
    %156 = vmatprep.subr.mxu0 0.0
    %157 = vmatpush2.msra.mxu0 0.0
    %158 = vmatprep.subr.mxu0 0.0
    %159 = vmatpush2.msra.mxu0 0.0
    %160 = vmatprep.subr.mxu0 0.0
    %161 = vmatpush2.msra.mxu0 0.0
    %162 = vmatprep.subr.mxu0 0.0
    %163 = vmatpush2.msra.mxu0 0.0
    %164 = vmatprep.subr.mxu0 0.0
    %165 = vmatpush2.msra.mxu0 0.0
    %166 = vmatprep.subr.mxu0 0.0
    %167 = vmatpush2.msra.mxu0 0.0
    %168 = vmatprep.mubr.f32.mxu0 0.0
    %169 = vmatmul.mubr.f32.gmra.mxu0 %v102
    %v170 = vpop.f32.mrf.mxu0
    %v171 = vadd.f32 %v99, %v170
    %v172 = vpop.f32.mrf.mxu0
    %173 = vdwg.mxu0
    %v174 = vmax.f32 %v171, 0.0
    %v175 = vlaneseq
    %v176 = vshrl.u32 %v175, 7
    %v177 = vsub.s32 1, %v176
    %v178 = vrot.slane %v95, %v177
    %179 = vmatprep.subr.mxu0 0.0
    %180 = vmatpush1.msra.mxu0 %v46
    %181 = vmatprep.subr.mxu0 0.0
    %182 = vmatpush1.msra.mxu0 %v45
    %183 = vmatprep.subr.mxu0 0.0
    %184 = vmatpush1.msra.mxu0 %v44
    %185 = vmatprep.subr.mxu0 0.0
    %186 = vmatpush1.msra.mxu0 %v43
    %187 = vmatprep.subr.mxu0 0.0
    %188 = vmatpush1.msra.mxu0 %v42
    %189 = vmatprep.subr.mxu0 0.0
    %190 = vmatpush1.msra.mxu0 %v41
    %191 = vmatprep.subr.mxu0 0.0
    %192 = vmatpush1.msra.mxu0 %v40
    %193 = vmatprep.subr.mxu0 0.0
    %194 = vmatpush1.msra.mxu0 %v39
    %195 = vmatprep.subr.mxu0 0.0
    %196 = vmatpush1.msra.mxu0 %v38
    %197 = vmatprep.subr.mxu0 0.0
    %198 = vmatpush1.msra.mxu0 %v37
    %199 = vmatprep.subr.mxu0 0.0
    %200 = vmatpush1.msra.mxu0 %v36
    %201 = vmatprep.subr.mxu0 0.0
    %202 = vmatpush1.msra.mxu0 %v35
    %203 = vmatprep.subr.mxu0 0.0
    %204 = vmatpush1.msra.mxu0 %v34
    %205 = vmatprep.subr.mxu0 0.0
    %206 = vmatpush1.msra.mxu0 %v33
    %207 = vmatprep.subr.mxu0 0.0
    %208 = vmatpush1.msra.mxu0 %v32
    %209 = vmatprep.subr.mxu0 0.0
    %210 = vmatpush1.msra.mxu0 %v31
    %211 = vmatprep.subr.mxu0 0.0
    %212 = vmatpush2.msra.mxu0 0.0
    %213 = vmatprep.subr.mxu0 0.0
    %214 = vmatpush2.msra.mxu0 0.0
    %215 = vmatprep.subr.mxu0 0.0
    %216 = vmatpush2.msra.mxu0 0.0
    %217 = vmatprep.subr.mxu0 0.0
    %218 = vmatpush2.msra.mxu0 0.0
    %219 = vmatprep.subr.mxu0 0.0
    %220 = vmatpush2.msra.mxu0 0.0
    %221 = vmatprep.subr.mxu0 0.0
    %222 = vmatpush2.msra.mxu0 0.0
    %223 = vmatprep.subr.mxu0 0.0
    %224 = vmatpush2.msra.mxu0 0.0
    %225 = vmatprep.subr.mxu0 0.0
    %226 = vmatpush2.msra.mxu0 0.0
    %227 = vmatprep.subr.mxu0 0.0
    %228 = vmatpush2.msra.mxu0 0.0
    %229 = vmatprep.subr.mxu0 0.0
    %230 = vmatpush2.msra.mxu0 0.0
    %231 = vmatprep.subr.mxu0 0.0
    %232 = vmatpush2.msra.mxu0 0.0
    %233 = vmatprep.subr.mxu0 0.0
    %234 = vmatpush2.msra.mxu0 0.0
    %235 = vmatprep.subr.mxu0 0.0
    %236 = vmatpush2.msra.mxu0 0.0
    %237 = vmatprep.subr.mxu0 0.0
    %238 = vmatpush2.msra.mxu0 0.0
    %239 = vmatprep.subr.mxu0 0.0
    %240 = vmatpush2.msra.mxu0 0.0
    %241 = vmatprep.subr.mxu0 0.0
    %242 = vmatpush2.msra.mxu0 0.0
    %243 = vmatprep.mubr.f32.mxu0 0.0
    %244 = vmatmul.mubr.f32.gmra.mxu0 %v174
    %v245 = vpop.f32.mrf.mxu0
    %v246 = vadd.f32 %v178, %v245
    %v247 = vpop.f32.mrf.mxu0
    %248 = vdwg.mxu0
    %v249 = vmax.f32 %v246, 0.0
    %v250 = vlaneseq
    %v251 = vshrl.u32 %v250, 7
    %v252 = vsub.s32 2, %v251
    %v253 = vrot.slane %v95, %v252
    %254 = vmatprep.subr.mxu0 0.0
    %255 = vmatpush1.msra.mxu0 %v62
    %256 = vmatprep.subr.mxu0 0.0
    %257 = vmatpush1.msra.mxu0 %v61
    %258 = vmatprep.subr.mxu0 0.0
    %259 = vmatpush1.msra.mxu0 %v60
    %260 = vmatprep.subr.mxu0 0.0
    %261 = vmatpush1.msra.mxu0 %v59
    %262 = vmatprep.subr.mxu0 0.0
    %263 = vmatpush1.msra.mxu0 %v58
    %264 = vmatprep.subr.mxu0 0.0
    %265 = vmatpush1.msra.mxu0 %v57
    %266 = vmatprep.subr.mxu0 0.0
    %267 = vmatpush1.msra.mxu0 %v56
    %268 = vmatprep.subr.mxu0 0.0
    %269 = vmatpush1.msra.mxu0 %v55
    %270 = vmatprep.subr.mxu0 0.0
    %271 = vmatpush1.msra.mxu0 %v54
    %272 = vmatprep.subr.mxu0 0.0
    %273 = vmatpush1.msra.mxu0 %v53
    %274 = vmatprep.subr.mxu0 0.0
    %275 = vmatpush1.msra.mxu0 %v52
    %276 = vmatprep.subr.mxu0 0.0
    %277 = vmatpush1.msra.mxu0 %v51
    %278 = vmatprep.subr.mxu0 0.0
    %279 = vmatpush1.msra.mxu0 %v50
    %280 = vmatprep.subr.mxu0 0.0
    %281 = vmatpush1.msra.mxu0 %v49
    %282 = vmatprep.subr.mxu0 0.0
    %283 = vmatpush1.msra.mxu0 %v48
    %284 = vmatprep.subr.mxu0 0.0
    %285 = vmatpush1.msra.mxu0 %v47
    %286 = vmatprep.subr.mxu0 0.0
    %287 = vmatpush2.msra.mxu0 0.0
    %288 = vmatprep.subr.mxu0 0.0
    %289 = vmatpush2.msra.mxu0 0.0
    %290 = vmatprep.subr.mxu0 0.0
    %291 = vmatpush2.msra.mxu0 0.0
    %292 = vmatprep.subr.mxu0 0.0
    %293 = vmatpush2.msra.mxu0 0.0
    %294 = vmatprep.subr.mxu0 0.0
    %295 = vmatpush2.msra.mxu0 0.0
    %296 = vmatprep.subr.mxu0 0.0
    %297 = vmatpush2.msra.mxu0 0.0
    %298 = vmatprep.subr.mxu0 0.0
    %299 = vmatpush2.msra.mxu0 0.0
    %300 = vmatprep.subr.mxu0 0.0
    %301 = vmatpush2.msra.mxu0 0.0
    %302 = vmatprep.subr.mxu0 0.0
    %303 = vmatpush2.msra.mxu0 0.0
    %304 = vmatprep.subr.mxu0 0.0
    %305 = vmatpush2.msra.mxu0 0.0
    %306 = vmatprep.subr.mxu0 0.0
    %307 = vmatpush2.msra.mxu0 0.0
    %308 = vmatprep.subr.mxu0 0.0
    %309 = vmatpush2.msra.mxu0 0.0
    %310 = vmatprep.subr.mxu0 0.0
    %311 = vmatpush2.msra.mxu0 0.0
    %312 = vmatprep.subr.mxu0 0.0
    %313 = vmatpush2.msra.mxu0 0.0
    %314 = vmatprep.subr.mxu0 0.0
    %315 = vmatpush2.msra.mxu0 0.0
    %316 = vmatprep.subr.mxu0 0.0
    %317 = vmatpush2.msra.mxu0 0.0
    %318 = vmatprep.mubr.f32.mxu0 0.0
    %319 = vmatmul.mubr.f32.gmra.mxu0 %v249
    %v320 = vpop.f32.mrf.mxu0
    %v321 = vadd.f32 %v253, %v320
    %v322 = vpop.f32.mrf.mxu0
    %323 = vdwg.mxu0
    %v324 = vmax.f32 %v321, 0.0
    %v325 = vlaneseq
    %v326 = vshrl.u32 %v325, 7
    %v327 = vsub.s32 3, %v326
    %v328 = vrot.slane %v95, %v327
    %329 = vmatprep.subr.mxu0 0.0
    %330 = vmatpush1.msra.mxu0 %v78
    %331 = vmatprep.subr.mxu0 0.0
    %332 = vmatpush1.msra.mxu0 %v77
    %333 = vmatprep.subr.mxu0 0.0
    %334 = vmatpush1.msra.mxu0 %v76
    %335 = vmatprep.subr.mxu0 0.0
    %336 = vmatpush1.msra.mxu0 %v75
    %337 = vmatprep.subr.mxu0 0.0
    %338 = vmatpush1.msra.mxu0 %v74
    %339 = vmatprep.subr.mxu0 0.0
    %340 = vmatpush1.msra.mxu0 %v73
    %341 = vmatprep.subr.mxu0 0.0
    %342 = vmatpush1.msra.mxu0 %v72
    %343 = vmatprep.subr.mxu0 0.0
    %344 = vmatpush1.msra.mxu0 %v71
    %345 = vmatprep.subr.mxu0 0.0
    %346 = vmatpush1.msra.mxu0 %v70
    %347 = vmatprep.subr.mxu0 0.0
    %348 = vmatpush1.msra.mxu0 %v69
    %349 = vmatprep.subr.mxu0 0.0
    %350 = vmatpush1.msra.mxu0 %v68
    %351 = vmatprep.subr.mxu0 0.0
    %352 = vmatpush1.msra.mxu0 %v67
    %353 = vmatprep.subr.mxu0 0.0
    %354 = vmatpush1.msra.mxu0 %v66
    %355 = vmatprep.subr.mxu0 0.0
    %356 = vmatpush1.msra.mxu0 %v65
    %357 = vmatprep.subr.mxu0 0.0
    %358 = vmatpush1.msra.mxu0 %v64
    %359 = vmatprep.subr.mxu0 0.0
    %360 = vmatpush1.msra.mxu0 %v63
    %361 = vmatprep.subr.mxu0 0.0
    %362 = vmatpush2.msra.mxu0 0.0
    %363 = vmatprep.subr.mxu0 0.0
    %364 = vmatpush2.msra.mxu0 0.0
    %365 = vmatprep.subr.mxu0 0.0
    %366 = vmatpush2.msra.mxu0 0.0
    %367 = vmatprep.subr.mxu0 0.0
    %368 = vmatpush2.msra.mxu0 0.0
    %369 = vmatprep.subr.mxu0 0.0
    %370 = vmatpush2.msra.mxu0 0.0
    %371 = vmatprep.subr.mxu0 0.0
    %372 = vmatpush2.msra.mxu0 0.0
    %373 = vmatprep.subr.mxu0 0.0
    %374 = vmatpush2.msra.mxu0 0.0
    %375 = vmatprep.subr.mxu0 0.0
    %376 = vmatpush2.msra.mxu0 0.0
    %377 = vmatprep.subr.mxu0 0.0
    %378 = vmatpush2.msra.mxu0 0.0
    %379 = vmatprep.subr.mxu0 0.0
    %380 = vmatpush2.msra.mxu0 0.0
    %381 = vmatprep.subr.mxu0 0.0
    %382 = vmatpush2.msra.mxu0 0.0
    %383 = vmatprep.subr.mxu0 0.0
    %384 = vmatpush2.msra.mxu0 0.0
    %385 = vmatprep.subr.mxu0 0.0
    %386 = vmatpush2.msra.mxu0 0.0
    %387 = vmatprep.subr.mxu0 0.0
    %388 = vmatpush2.msra.mxu0 0.0
    %389 = vmatprep.subr.mxu0 0.0
    %390 = vmatpush2.msra.mxu0 0.0
    %391 = vmatprep.subr.mxu0 0.0
    %392 = vmatpush2.msra.mxu0 0.0
    %393 = vmatprep.mubr.f32.mxu0 0.0
    %394 = vmatmul.mubr.f32.gmra.mxu0 %v324
    %v395 = vpop.f32.mrf.mxu0
    %v396 = vadd.f32 %v328, %v395
    %v397 = vpop.f32.mrf.mxu0
    %398 = vdwg.mxu0
    %v399 = vmax.f32 %v396, 0.0
    %v400 = vmul.f32 %v399, %v399
    %401 = vadd.xlane.f32.xlu0 %v400
    %v402 = vpop.xlane.xlu0 %401
    %v403 = vmax.f32 %v402, 1e-24
    %v404 = vrsqrt.pop %v403
    %v405 = vmul.f32 %v399, %v404
    %v406 = vlaneseq
    %v407 = vshrl.u32 %v406, 7
    %v408 = vsub.s32 4, %v407
    %v409 = vrot.slane %v95, %v408
    %410 = vmatprep.subr.mxu0 0.0
    %411 = vmatpush1.msra.mxu0 %v94
    %412 = vmatprep.subr.mxu0 0.0
    %413 = vmatpush1.msra.mxu0 %v93
    %414 = vmatprep.subr.mxu0 0.0
    %415 = vmatpush1.msra.mxu0 %v92
    %416 = vmatprep.subr.mxu0 0.0
    %417 = vmatpush1.msra.mxu0 %v91
    %418 = vmatprep.subr.mxu0 0.0
    %419 = vmatpush1.msra.mxu0 %v90
    %420 = vmatprep.subr.mxu0 0.0
    %421 = vmatpush1.msra.mxu0 %v89
    %422 = vmatprep.subr.mxu0 0.0
    %423 = vmatpush1.msra.mxu0 %v88
    %424 = vmatprep.subr.mxu0 0.0
    %425 = vmatpush1.msra.mxu0 %v87
    %426 = vmatprep.subr.mxu0 0.0
    %427 = vmatpush1.msra.mxu0 %v86
    %428 = vmatprep.subr.mxu0 0.0
    %429 = vmatpush1.msra.mxu0 %v85
    %430 = vmatprep.subr.mxu0 0.0
    %431 = vmatpush1.msra.mxu0 %v84
    %432 = vmatprep.subr.mxu0 0.0
    %433 = vmatpush1.msra.mxu0 %v83
    %434 = vmatprep.subr.mxu0 0.0
    %435 = vmatpush1.msra.mxu0 %v82
    %436 = vmatprep.subr.mxu0 0.0
    %437 = vmatpush1.msra.mxu0 %v81
    %438 = vmatprep.subr.mxu0 0.0
    %439 = vmatpush1.msra.mxu0 %v80
    %440 = vmatprep.subr.mxu0 0.0
    %441 = vmatpush1.msra.mxu0 %v79
    %442 = vmatprep.subr.mxu0 0.0
    %443 = vmatpush2.msra.mxu0 0.0
    %444 = vmatprep.subr.mxu0 0.0
    %445 = vmatpush2.msra.mxu0 0.0
    %446 = vmatprep.subr.mxu0 0.0
    %447 = vmatpush2.msra.mxu0 0.0
    %448 = vmatprep.subr.mxu0 0.0
    %449 = vmatpush2.msra.mxu0 0.0
    %450 = vmatprep.subr.mxu0 0.0
    %451 = vmatpush2.msra.mxu0 0.0
    %452 = vmatprep.subr.mxu0 0.0
    %453 = vmatpush2.msra.mxu0 0.0
    %454 = vmatprep.subr.mxu0 0.0
    %455 = vmatpush2.msra.mxu0 0.0
    %456 = vmatprep.subr.mxu0 0.0
    %457 = vmatpush2.msra.mxu0 0.0
    %458 = vmatprep.subr.mxu0 0.0
    %459 = vmatpush2.msra.mxu0 0.0
    %460 = vmatprep.subr.mxu0 0.0
    %461 = vmatpush2.msra.mxu0 0.0
    %462 = vmatprep.subr.mxu0 0.0
    %463 = vmatpush2.msra.mxu0 0.0
    %464 = vmatprep.subr.mxu0 0.0
    %465 = vmatpush2.msra.mxu0 0.0
    %466 = vmatprep.subr.mxu0 0.0
    %467 = vmatpush2.msra.mxu0 0.0
    %468 = vmatprep.subr.mxu0 0.0
    %469 = vmatpush2.msra.mxu0 0.0
    %470 = vmatprep.subr.mxu0 0.0
    %471 = vmatpush2.msra.mxu0 0.0
    %472 = vmatprep.subr.mxu0 0.0
    %473 = vmatpush2.msra.mxu0 0.0
    %474 = vmatprep.mubr.f32.mxu0 0.0
    %475 = vmatmul.mubr.f32.gmra.mxu0 %v405
    %v476 = vpop.f32.mrf.mxu0
    %v477 = vadd.f32 %v409, %v476
    %v478 = vpop.f32.mrf.mxu0
    %479 = vdwg.mxu0
    %v480 = vld [vmem:[%s1] sm:$0xff]
    %vm481 = vcmp.ne.f32.partialorder %v480, 0.0
    %v482 = vsel %vm481, %v477, -inf
    %483 = vmax.xlane.f32.xlu0 %v482
    %v484 = vpop.xlane.xlu0 %483
    %v485 = vsub.f32 %v482, %v484
    %v486 = vmul.f32 %v485, 1.442695
    %v487 = vpow.pop %v486
    %488 = vadd.xlane.f32.xlu0 %v487
    %v489 = vpop.xlane.xlu0 %488
    %v490 = vrcp.pop %v489
    %v491 = vmul.f32 %v487, %v490
    %v492 = vmax.f32 %v491, 1e-07
    %v493 = vmin.f32 %v492, 1.0
    %v494 = vlaneseq
    %v495 = vand.u32 %v494, 127
    %vm496 = vcmp.lt.s32.totalorder %v495, 8
    %v497 = vsel %vm496, %v493, 0.0
    %498 = vadd.xlane.f32.xlu0 %v497
    %v499 = vpop.xlane.xlu0 %498
    %v500 = vrcp.pop %v499
    %v501 = vmul.f32 %v497, %v500
    %vm502 = vcmp.eq.s32.totalorder %v495, 8
    %v503 = vsel %vm502, %v477, %v501
    %504 = vst [vmem:[%s3] sm:$0xff] %v503
    // Predicated region
    $region18: #{alternative_network_forward.1} parent=1 // pred_check
      _
    $region19: #{alternative_network_forward.1} parent=1 // pred_check_branch
      %506 = sbr.rel (0) target = $region21
    $region20: #{alternative_network_forward.1} parent=1 // pred_region
      _
    $region21: #{alternative_network_forward.1} parent=1 // pred_fallthru
      _
    // Predicated region
    $region22: #{alternative_network_forward.1} parent=1 // pred_check
      _
    $region23: #{alternative_network_forward.1} parent=1 // pred_check_branch
      %508 = sbr.rel (0) target = $region25
    $region24: #{alternative_network_forward.1} parent=1 // pred_region
      _
    $region25: #{alternative_network_forward.1} parent=1 // pred_fallthru
      _
    %509 = vsyncpa [#allocation3], 1

</llo_original>
